<compile_context>
chip_gen: v7x
topology: tpu7x:2x2x1
jax: 0.10.0
libtpu: 0.0.40
codegen_flags: <defaults>
</compile_context>

<pallas_src>
import math

import jax
import jax.numpy as jnp
from jax.experimental import pallas as pl
from jax.experimental.pallas import tpu as pltpu


# ----------------------------------------------------------------------------
# Trace-time constants: 1-D taps and reflect-padded blur band matrices.
# ----------------------------------------------------------------------------
def _filter_taps(filter_type, ksize, H, W):
    """1-D taps (ky, kx) as Python floats plus a global scale (baked as constants)."""
    if filter_type == "Mean_Filter":
        return [1.0] * ksize, [1.0] * ksize, 1.0 / float(ksize * ksize)
    elif filter_type == "Gaussian_Filter":
        # The module passes sigma = (0.3*((W-1)*0.5-1)+0.8, 0.3*((H-1)*0.5-1)+0.8)
        # to kornia.gaussian_blur2d.  Kornia versions differ on (sigma_y, sigma_x)
        # ordering; for the square images used here the two interpretations agree.
        sigma_w = 0.3 * ((W - 1) * 0.5 - 1) + 0.8
        sigma_h = 0.3 * ((H - 1) * 0.5 - 1) + 0.8

        def g1d(k, sigma):
            xs = [i - (k - 1) / 2.0 for i in range(k)]
            g = [math.exp(-(v * v) / (2.0 * sigma * sigma)) for v in xs]
            s = sum(g)
            return [v / s for v in g]

        return g1d(ksize, sigma_h), g1d(ksize, sigma_w), 1.0
    else:
        raise NotImplementedError(f"filter_type={filter_type!r} not supported")


def _reflect(i, n):
    if i < 0:
        return -i
    if i >= n:
        return 2 * (n - 1) - i
    return i


def _right_blur_matrix(taps, n, scale):
    """A (n,n) with (v @ A)[:, w] == sum_j taps[j]*scale * v[:, reflect(w + j - pad)]."""
    pad = len(taps) // 2
    m = [[0.0] * n for _ in range(n)]
    for w in range(n):
        for j, t in enumerate(taps):
            m[_reflect(w + j - pad, n)][w] += t * scale
    return jnp.array(m, jnp.float32)


def _left_blur_matrix(taps, n):
    """B (n,n) with (B @ v)[h, :] == sum_j taps[j] * v[reflect(h + j - pad), :]."""
    pad = len(taps) // 2
    m = [[0.0] * n for _ in range(n)]
    for h in range(n):
        for j, t in enumerate(taps):
            m[h][_reflect(h + j - pad, n)] += t
    return jnp.array(m, jnp.float32)


# ----------------------------------------------------------------------------
# Kernel: single step, whole batch.  Two MXU matmuls + one fused VPU add/store.
# ----------------------------------------------------------------------------
def _denoise_kernel(x_ref, wm_ref, m_ref, bias_ref, o_ref):
    # x_ref    : VMEM (N*C, H*W) f32  -- flattened planes (lane-dense), also the residual
    # wm_ref   : VMEM (N*C, N*C) f32  -- kron(I_N, w2): batched 1x1-conv channel mix
    # m_ref    : VMEM (H*W, H*W) f32  -- kron(B^T, A): fused reflect blur (both axes)
    # bias_ref : VMEM (N*C, 1)   f32  -- conv bias, broadcast over lanes
    # o_ref    : VMEM (N*C, H*W) f32
    x = x_ref[...]                                                        # single load
    blur = jnp.dot(x, m_ref[...], preferred_element_type=jnp.float32)    # reflect blur (h+v)
    mix = jnp.dot(wm_ref[...], blur, preferred_element_type=jnp.float32)  # 1x1 conv (channel mix)
    o_ref[...] = x + mix + bias_ref[...]                                  # residual+bias, one store


# ----------------------------------------------------------------------------
# Wrapper: NCHW in -> NCHW out.  Only free contiguous reshapes outside the kernel.
# ----------------------------------------------------------------------------
def denoising_block_forward(x_nchw, conv_w, conv_b, *, ksize, filter_type):
    """x_nchw: (N, C, H, W); conv_w: (C, C, 1, 1); conv_b: (C,)."""
    N, C, H, W = x_nchw.shape
    pad = ksize // 2
    assert pad < H and pad < W, "reflect padding needs ksize // 2 < spatial dims"
    # TODO(synk): kron fusion only for small maps/batches; see header for the
    # lane-dense C-on-lanes path at real ResNet12 widths.
    assert H * W <= 4096 and N * C <= 1024, "kron-fused path is for small shapes only"

    ky, kx, scale = _filter_taps(filter_type, ksize, H, W)
    bmat = _left_blur_matrix(ky, H)                        # (H, H)   vertical taps
    amat = _right_blur_matrix(kx, W, scale)                # (W, W)   horizontal taps (+scale)

    # Fused blur operator on row-major-flattened planes:
    #   vec_row(B @ Xc @ A) = vec_row(Xc) @ kron(B^T, A)
    m = jnp.kron(bmat.T, amat)                             # (H*W, H*W) trace-time constant
    # Channel-mix operator on the stacked (N*C) plane axis (block-diagonal over batch).
    w2 = conv_w.reshape(C, C).astype(jnp.float32)          # (C_out, C_in)
    wm = jnp.kron(jnp.eye(N, dtype=jnp.float32), w2)       # (N*C, N*C)
    bias2 = jnp.broadcast_to(conv_b.astype(jnp.float32)[None, :], (N, C)).reshape(N * C, 1)

    x2 = x_nchw.astype(jnp.float32).reshape(N * C, H * W)  # free contiguous reshape

    out2 = pl.pallas_call(
        _denoise_kernel,
        out_shape=jax.ShapeDtypeStruct((N * C, H * W), jnp.float32),
        grid=(1,),
        in_specs=[
            pl.BlockSpec((N * C, H * W), lambda i: (0, 0)),   # x (and residual)
            pl.BlockSpec((N * C, N * C), lambda i: (0, 0)),   # kron(I_N, w2)
            pl.BlockSpec((H * W, H * W), lambda i: (0, 0)),   # kron(B^T, A)
            pl.BlockSpec((N * C, 1), lambda i: (0, 0)),       # bias column
        ],
        out_specs=pl.BlockSpec((N * C, H * W), lambda i: (0, 0)),
        compiler_params=pltpu.CompilerParams(
            dimension_semantics=("arbitrary",),   # single step; VMEM use < 1 MiB (default limit ok)
        ),
    )(x2, wm, m, bias2)
    return out2.reshape(N, C, H, W)


# ----------------------------------------------------------------------------
# Pure-JAX (XLA) reference: direct k x k reflect-padded conv, NCHW.
# ----------------------------------------------------------------------------
def _reference(x, conv_w, conv_b, *, ksize, filter_type):
    N, C, H, W = x.shape
    pad = ksize // 2
    ky, kx, scale = _filter_taps(filter_type, ksize, H, W)
    xpad = (jnp.pad(x, ((0, 0), (0, 0), (pad, pad), (pad, pad)), mode="reflect")
            if pad else x)
    blur = jnp.zeros_like(x)
    for dy in range(ksize):
        for dx in range(ksize):
            blur = blur + xpad[:, :, dy:dy + H, dx:dx + W] * (ky[dy] * kx[dx] * scale)
    w2 = conv_w.reshape(C, C)                              # (C_out, C_in)
    conv = jnp.einsum("oc,nchw->nohw", w2, blur) + conv_b.reshape(1, C, 1, 1)
    return x + conv


if __name__ == "__main__":
    # Small shapes consistent with the module: batch=2, in_planes=4, 16x16.
    N, C, H, W = 2, 4, 16, 16

    key = jax.random.PRNGKey(0)
    k_x, k_w, k_b = jax.random.split(key, 3)
    x = jax.random.normal(k_x, (N, C, H, W), dtype=jnp.float32)
    # Deterministic Conv2d(in_planes, in_planes, kernel_size=1) params
    # (kaiming-uniform-like bound, synthetic -- not a checkpoint load).
    bound = 1.0 / jnp.sqrt(jnp.float32(C))
    conv_w = jax.random.uniform(k_w, (C, C, 1, 1), jnp.float32, -bound, bound)
    conv_b = jax.random.uniform(k_b, (C,), jnp.float32, -bound, bound)

    configs = [(3, "Mean_Filter"), (5, "Mean_Filter"), (3, "Gaussian_Filter")]
    for ksize, ftype in configs:
        out = denoising_block_forward(x, conv_w, conv_b, ksize=ksize,
                                      filter_type=ftype)
        out = jax.block_until_ready(out)
        ref = _reference(x, conv_w, conv_b, ksize=ksize, filter_type=ftype)
        assert out.shape == (N, C, H, W)
        err = jnp.max(jnp.abs(out - ref))
        # Slightly looser atol than pure-VPU: the fused blur/mix run through the
        # MXU f32 path with a longer (H*W) contraction.
        assert jnp.allclose(out, ref, atol=1e-4, rtol=1e-5), \
            f"{ftype} ksize={ksize}: max abs err {err}"

    print("KERNEL_OK")
</pallas_src>

<mosaic_0001>
module attributes {stable_mosaic.version = 11 : i64} {
  func.func @_denoise_kernel(%arg0: i32, %arg1: memref<8x256xf32, #tpu.memory_space<vmem>>, %arg2: memref<8x8xf32, #tpu.memory_space<vmem>>, %arg3: memref<256x256xf32, #tpu.memory_space<vmem>>, %arg4: memref<8x1xf32, #tpu.memory_space<vmem>>, %arg5: memref<8x256xf32, #tpu.memory_space<vmem>>) attributes {dimension_semantics = [#tpu.dimension_semantics<arbitrary>], iteration_bounds = array<i64: 1>, scalar_prefetch = 0 : i64, scratch_operands = 0 : i64, tpu.core_type = #tpu.core_type<tc>, window_params = [{pipeline_mode = #tpu.pipeline_mode<synchronous>, transform_indices = @transform_0, window_bounds = array<i64: 8, 256>}, {pipeline_mode = #tpu.pipeline_mode<synchronous>, transform_indices = @transform_1, window_bounds = array<i64: 8, 8>}, {pipeline_mode = #tpu.pipeline_mode<synchronous>, transform_indices = @transform_2, window_bounds = array<i64: 256, 256>}, {pipeline_mode = #tpu.pipeline_mode<synchronous>, transform_indices = @transform_3, window_bounds = array<i64: 8, 1>}, {pipeline_mode = #tpu.pipeline_mode<synchronous>, transform_indices = @transform_4, window_bounds = array<i64: 8, 256>}]} {
    %c0 = arith.constant 0 : index
    %c0_0 = arith.constant 0 : index
    %0 = vector.load %arg1[%c0, %c0_0] : memref<8x256xf32, #tpu.memory_space<vmem>>, vector<8x256xf32>
    %c0_1 = arith.constant 0 : index
    %c0_2 = arith.constant 0 : index
    %1 = vector.load %arg3[%c0_1, %c0_2] : memref<256x256xf32, #tpu.memory_space<vmem>>, vector<256x256xf32>
    %cst = arith.constant dense<0.000000e+00> : vector<8x256xf32>
    %2 = tpu.matmul %0, %1, %cst {dimension_numbers = #tpu.dot_dimension_numbers<[1], [0], [0], [1], [0, 0, 1, 1], [], []>} : vector<8x256xf32>, vector<256x256xf32>, vector<8x256xf32> -> vector<8x256xf32>
    %c0_3 = arith.constant 0 : index
    %c0_4 = arith.constant 0 : index
    %3 = vector.load %arg2[%c0_3, %c0_4] : memref<8x8xf32, #tpu.memory_space<vmem>>, vector<8x8xf32>
    %cst_5 = arith.constant dense<0.000000e+00> : vector<8x256xf32>
    %4 = tpu.matmul %3, %2, %cst_5 {dimension_numbers = #tpu.dot_dimension_numbers<[1], [0], [0], [1], [0, 0, 1, 1], [], []>} : vector<8x8xf32>, vector<8x256xf32>, vector<8x256xf32> -> vector<8x256xf32>
    %5 = arith.addf %0, %4 : vector<8x256xf32>
    %c0_6 = arith.constant 0 : index
    %c0_7 = arith.constant 0 : index
    %6 = vector.load %arg4[%c0_6, %c0_7] : memref<8x1xf32, #tpu.memory_space<vmem>>, vector<8x1xf32>
    %7 = vector.broadcast %6 : vector<8x1xf32> to vector<8x256xf32>
    %8 = arith.addf %5, %7 : vector<8x256xf32>
    %c0_8 = arith.constant 0 : index
    %c0_9 = arith.constant 0 : index
    %9 = vector.load %arg5[%c0_8, %c0_9] : memref<8x256xf32, #tpu.memory_space<vmem>>, vector<8x256xf32>
    tpu.vector_store %arg5[%c0_8, %c0_9], %8 {strides = array<i32>} : memref<8x256xf32, #tpu.memory_space<vmem>>, vector<8x256xf32>,
    return
  }
  func.func @transform_0(%arg0: i32) -> (i32, i32) {
    %c0_i32 = arith.constant 0 : i32
    %c0_i32_0 = arith.constant 0 : i32
    %c0_i32_1 = arith.constant 0 : i32
    return %c0_i32, %c0_i32_0 : i32, i32
  }
  func.func @transform_1(%arg0: i32) -> (i32, i32) {
    %c0_i32 = arith.constant 0 : i32
    %c0_i32_0 = arith.constant 0 : i32
    %c0_i32_1 = arith.constant 0 : i32
    return %c0_i32, %c0_i32_0 : i32, i32
  }
  func.func @transform_2(%arg0: i32) -> (i32, i32) {
    %c0_i32 = arith.constant 0 : i32
    %c0_i32_0 = arith.constant 0 : i32
    %c0_i32_1 = arith.constant 0 : i32
    return %c0_i32, %c0_i32_0 : i32, i32
  }
  func.func @transform_3(%arg0: i32) -> (i32, i32) {
    %c0_i32 = arith.constant 0 : i32
    %c0_i32_0 = arith.constant 0 : i32
    %c0_i32_1 = arith.constant 0 : i32
    return %c0_i32, %c0_i32_0 : i32, i32
  }
  func.func @transform_4(%arg0: i32) -> (i32, i32) {
    %c0_i32 = arith.constant 0 : i32
    %c0_i32_0 = arith.constant 0 : i32
    %c0_i32_1 = arith.constant 0 : i32
    return %c0_i32, %c0_i32_0 : i32, i32
  }
}

</mosaic_0001>

<llo_original>
// kernel: tpu_custom_call.1
$region0: #{tpu_custom_call.1}
  #allocation0 [shape = 'u32[]', space=smem, size = 0x4, offset = 0x4, fixed_abs, tag = 'smem constant byte address 0x4 - core index']
  #allocation1 [shape = 'u32[144,128]{1,0:T(1,128)}', space=vmem, size = 0x12000, scoped, tag = 'internal scratch']
  %s0 = inlined_call_operand.hbm [shape: f32[8,256], index: 0, kind: input, shape index: {}]
  %s1 = inlined_call_operand.vmem [shape: f32[8,8], index: 1, kind: input, shape index: {}]
  %s2 = inlined_call_operand.hbm [shape: f32[256,256], index: 2, kind: input, shape index: {}]
  %s3 = inlined_call_operand.vmem [shape: f32[8,1], index: 3, kind: input, shape index: {}]
  %s4 = inlined_call_operand.hbm [shape: f32[8,256], index: 4, kind: output, shape index: {}]
  %s5 = sld [smem:[#allocation0]]
  $region34: #{tpu_custom_call.1} parent=0
    _
  %s7 = ssub.s32 1, %s5
  %s8 = scalar_select 0, %s7, %s5
  $region1: #{tpu_custom_call.1} parent=0
    #allocation2 [shape = 'u8[8192]{0}', space=vmem, size = 0x2000, scoped, tag = 'input window, operand 0, single buffered']
    #allocation3 [shape = 's32[1]{0}', space=sflag, size = 0x4, scoped, tag = 'scoped memory for tpu_custom_call.1']
    #allocation4 [shape = 's32[1]{0}', space=sflag, size = 0x4, scoped, tag = 'scoped memory for tpu_custom_call.1']
    #allocation5 [shape = 'u8[262144]{0}', space=vmem, size = 0x40000, scoped, tag = 'input window, operand 2, single buffered']
    #allocation6 [shape = 's32[1]{0}', space=sflag, size = 0x4, scoped, tag = 'scoped memory for tpu_custom_call.1']
    #allocation7 [shape = 'u8[8192]{0}', space=vmem, size = 0x2000, scoped, tag = 'output window, operand 0, single buffered']
    %9 = vsyncpa [#allocation3], 0
    %10 = vsyncpa [#allocation6], 0
    %11 = vsyncpa [#allocation4], 0
    // Predicated region
    $region2: #{tpu_custom_call.1} parent=1 // pred_check
      _
    $region3: #{tpu_custom_call.1} parent=1 // pred_check_branch
      %13 = sbr.rel (0) target = $region5
    $region4: #{tpu_custom_call.1} parent=1 // pred_region
      %s15 = ssub.s32 256, 256
      %16 = vsyncadd [#allocation3], %s15
      %s18 = sshll.u32 [#allocation2], 4
      %s19 = int_to_ptr.vmem [resolvable:$true] %s18
      %21 = dma.hbm_to_vmem [thread:$0]  %s0, 256, %s19, [#allocation3]
    $region5: #{tpu_custom_call.1} parent=1 // pred_fallthru
      _
    // Predicated region
    $region6: #{tpu_custom_call.1} parent=1 // pred_check
      _
    $region7: #{tpu_custom_call.1} parent=1 // pred_check_branch
      %23 = sbr.rel (0) target = $region9
    $region8: #{tpu_custom_call.1} parent=1 // pred_region
      _
    $region9: #{tpu_custom_call.1} parent=1 // pred_fallthru
      _
    // Predicated region
    $region10: #{tpu_custom_call.1} parent=1 // pred_check
      _
    $region11: #{tpu_custom_call.1} parent=1 // pred_check_branch
      %25 = sbr.rel (0) target = $region13
    $region12: #{tpu_custom_call.1} parent=1 // pred_region
      %s27 = ssub.s32 8192, 8192
      %28 = vsyncadd [#allocation6], %s27
      %s29 = sshll.u32 [#allocation5], 4
      %s30 = int_to_ptr.vmem [resolvable:$true] %s29
      %35 = dma.hbm_to_vmem [thread:$0]  %s2, 8192, %s30, [#allocation6], 256, 256, 16
    $region13: #{tpu_custom_call.1} parent=1 // pred_fallthru
      _
    // Predicated region
    $region14: #{tpu_custom_call.1} parent=1 // pred_check
      _
    $region15: #{tpu_custom_call.1} parent=1 // pred_check_branch
      %37 = sbr.rel (0) target = $region17
    $region16: #{tpu_custom_call.1} parent=1 // pred_region
      _
    $region17: #{tpu_custom_call.1} parent=1 // pred_fallthru
      _
    // Predicated region
    $region18: #{tpu_custom_call.1} parent=1 // pred_check
      _
    $region19: #{tpu_custom_call.1} parent=1 // pred_check_branch
      %39 = sbr.rel (0) target = $region21
    $region20: #{tpu_custom_call.1} parent=1 // pred_region
      %40 = dma.done [#allocation3], 256
    $region21: #{tpu_custom_call.1} parent=1 // pred_fallthru
      _
    // Predicated region
    $region22: #{tpu_custom_call.1} parent=1 // pred_check
      _
    $region23: #{tpu_custom_call.1} parent=1 // pred_check_branch
      %42 = sbr.rel (0) target = $region25
    $region24: #{tpu_custom_call.1} parent=1 // pred_region
      %43 = dma.done [#allocation6], 8192
    $region25: #{tpu_custom_call.1} parent=1 // pred_fallthru
      _
    %v44 = vld [vmem:[#allocation2] sm:$0xff]
    %v45 = vld [vmem:[#allocation2 + $0x8] sm:$0xff]
    %v46 = vld [vmem:[#allocation5] sm:$0xff]
    %v47 = vld [vmem:[#allocation5 + $0x8] sm:$0xff]
    %v48 = vld [vmem:[#allocation5 + $0x10] sm:$0xff]
    %v49 = vld [vmem:[#allocation5 + $0x18] sm:$0xff]
    %v50 = vld [vmem:[#allocation5 + $0x20] sm:$0xff]
    %v51 = vld [vmem:[#allocation5 + $0x28] sm:$0xff]
    %v52 = vld [vmem:[#allocation5 + $0x30] sm:$0xff]
    %v53 = vld [vmem:[#allocation5 + $0x38] sm:$0xff]
    %v54 = vld [vmem:[#allocation5 + $0x40] sm:$0xff]
    %v55 = vld [vmem:[#allocation5 + $0x48] sm:$0xff]
    %v56 = vld [vmem:[#allocation5 + $0x50] sm:$0xff]
    %v57 = vld [vmem:[#allocation5 + $0x58] sm:$0xff]
    %v58 = vld [vmem:[#allocation5 + $0x60] sm:$0xff]
    %v59 = vld [vmem:[#allocation5 + $0x68] sm:$0xff]
    %v60 = vld [vmem:[#allocation5 + $0x70] sm:$0xff]
    %v61 = vld [vmem:[#allocation5 + $0x78] sm:$0xff]
    %v62 = vld [vmem:[#allocation5 + $0x80] sm:$0xff]
    %v63 = vld [vmem:[#allocation5 + $0x88] sm:$0xff]
    %v64 = vld [vmem:[#allocation5 + $0x90] sm:$0xff]
    %v65 = vld [vmem:[#allocation5 + $0x98] sm:$0xff]
    %v66 = vld [vmem:[#allocation5 + $0xa0] sm:$0xff]
    %v67 = vld [vmem:[#allocation5 + $0xa8] sm:$0xff]
    %v68 = vld [vmem:[#allocation5 + $0xb0] sm:$0xff]
    %v69 = vld [vmem:[#allocation5 + $0xb8] sm:$0xff]
    %v70 = vld [vmem:[#allocation5 + $0xc0] sm:$0xff]
    %v71 = vld [vmem:[#allocation5 + $0xc8] sm:$0xff]
    %v72 = vld [vmem:[#allocation5 + $0xd0] sm:$0xff]
    %v73 = vld [vmem:[#allocation5 + $0xd8] sm:$0xff]
    %v74 = vld [vmem:[#allocation5 + $0xe0] sm:$0xff]
    %v75 = vld [vmem:[#allocation5 + $0xe8] sm:$0xff]
    %v76 = vld [vmem:[#allocation5 + $0xf0] sm:$0xff]
    %v77 = vld [vmem:[#allocation5 + $0xf8] sm:$0xff]
    %v78 = vld [vmem:[#allocation5 + $0x100] sm:$0xff]
    %v79 = vld [vmem:[#allocation5 + $0x108] sm:$0xff]
    %v80 = vld [vmem:[#allocation5 + $0x110] sm:$0xff]
    %v81 = vld [vmem:[#allocation5 + $0x118] sm:$0xff]
    %v82 = vld [vmem:[#allocation5 + $0x120] sm:$0xff]
    %v83 = vld [vmem:[#allocation5 + $0x128] sm:$0xff]
    %v84 = vld [vmem:[#allocation5 + $0x130] sm:$0xff]
    %v85 = vld [vmem:[#allocation5 + $0x138] sm:$0xff]
    %v86 = vld [vmem:[#allocation5 + $0x140] sm:$0xff]
    %v87 = vld [vmem:[#allocation5 + $0x148] sm:$0xff]
    %v88 = vld [vmem:[#allocation5 + $0x150] sm:$0xff]
    %v89 = vld [vmem:[#allocation5 + $0x158] sm:$0xff]
    %v90 = vld [vmem:[#allocation5 + $0x160] sm:$0xff]
    %v91 = vld [vmem:[#allocation5 + $0x168] sm:$0xff]
    %v92 = vld [vmem:[#allocation5 + $0x170] sm:$0xff]
    %v93 = vld [vmem:[#allocation5 + $0x178] sm:$0xff]
    %v94 = vld [vmem:[#allocation5 + $0x180] sm:$0xff]
    %v95 = vld [vmem:[#allocation5 + $0x188] sm:$0xff]
    %v96 = vld [vmem:[#allocation5 + $0x190] sm:$0xff]
    %v97 = vld [vmem:[#allocation5 + $0x198] sm:$0xff]
    %v98 = vld [vmem:[#allocation5 + $0x1a0] sm:$0xff]
    %v99 = vld [vmem:[#allocation5 + $0x1a8] sm:$0xff]
    %v100 = vld [vmem:[#allocation5 + $0x1b0] sm:$0xff]
    %v101 = vld [vmem:[#allocation5 + $0x1b8] sm:$0xff]
    %v102 = vld [vmem:[#allocation5 + $0x1c0] sm:$0xff]
    %v103 = vld [vmem:[#allocation5 + $0x1c8] sm:$0xff]
    %v104 = vld [vmem:[#allocation5 + $0x1d0] sm:$0xff]
    %v105 = vld [vmem:[#allocation5 + $0x1d8] sm:$0xff]
    %v106 = vld [vmem:[#allocation5 + $0x1e0] sm:$0xff]
    %v107 = vld [vmem:[#allocation5 + $0x1e8] sm:$0xff]
    %v108 = vld [vmem:[#allocation5 + $0x1f0] sm:$0xff]
    %v109 = vld [vmem:[#allocation5 + $0x1f8] sm:$0xff]
    %110 = vmatprep.subr.mxu0 %v47
    %111 = vmatpush1.msra.mxu0 %v46
    %112 = vmatprep.subr.mxu0 %v49
    %113 = vmatpush1.msra.mxu0 %v48
    %114 = vmatprep.subr.mxu0 %v51
    %115 = vmatpush1.msra.mxu0 %v50
    %116 = vmatprep.subr.mxu0 %v53
    %117 = vmatpush1.msra.mxu0 %v52
    %118 = vmatprep.subr.mxu0 %v55
    %119 = vmatpush1.msra.mxu0 %v54
    %120 = vmatprep.subr.mxu0 %v57
    %121 = vmatpush1.msra.mxu0 %v56
    %122 = vmatprep.subr.mxu0 %v59
    %123 = vmatpush1.msra.mxu0 %v58
    %124 = vmatprep.subr.mxu0 %v61
    %125 = vmatpush1.msra.mxu0 %v60
    %126 = vmatprep.subr.mxu0 %v63
    %127 = vmatpush1.msra.mxu0 %v62
    %128 = vmatprep.subr.mxu0 %v65
    %129 = vmatpush1.msra.mxu0 %v64
    %130 = vmatprep.subr.mxu0 %v67
    %131 = vmatpush1.msra.mxu0 %v66
    %132 = vmatprep.subr.mxu0 %v69
    %133 = vmatpush1.msra.mxu0 %v68
    %134 = vmatprep.subr.mxu0 %v71
    %135 = vmatpush1.msra.mxu0 %v70
    %136 = vmatprep.subr.mxu0 %v73
    %137 = vmatpush1.msra.mxu0 %v72
    %138 = vmatprep.subr.mxu0 %v75
    %139 = vmatpush1.msra.mxu0 %v74
    %140 = vmatprep.subr.mxu0 %v77
    %141 = vmatpush1.msra.mxu0 %v76
    %142 = vmatprep.subr.mxu0 %v79
    %143 = vmatpush1.msra.mxu0 %v78
    %144 = vmatprep.subr.mxu0 %v81
    %145 = vmatpush1.msra.mxu0 %v80
    %146 = vmatprep.subr.mxu0 %v83
    %147 = vmatpush1.msra.mxu0 %v82
    %148 = vmatprep.subr.mxu0 %v85
    %149 = vmatpush1.msra.mxu0 %v84
    %150 = vmatprep.subr.mxu0 %v87
    %151 = vmatpush1.msra.mxu0 %v86
    %152 = vmatprep.subr.mxu0 %v89
    %153 = vmatpush1.msra.mxu0 %v88
    %154 = vmatprep.subr.mxu0 %v91
    %155 = vmatpush1.msra.mxu0 %v90
    %156 = vmatprep.subr.mxu0 %v93
    %157 = vmatpush1.msra.mxu0 %v92
    %158 = vmatprep.subr.mxu0 %v95
    %159 = vmatpush1.msra.mxu0 %v94
    %160 = vmatprep.subr.mxu0 %v97
    %161 = vmatpush1.msra.mxu0 %v96
    %162 = vmatprep.subr.mxu0 %v99
    %163 = vmatpush1.msra.mxu0 %v98
    %164 = vmatprep.subr.mxu0 %v101
    %165 = vmatpush1.msra.mxu0 %v100
    %166 = vmatprep.subr.mxu0 %v103
    %167 = vmatpush1.msra.mxu0 %v102
    %168 = vmatprep.subr.mxu0 %v105
    %169 = vmatpush1.msra.mxu0 %v104
    %170 = vmatprep.subr.mxu0 %v107
    %171 = vmatpush1.msra.mxu0 %v106
    %172 = vmatprep.subr.mxu0 %v109
    %173 = vmatpush1.msra.mxu0 %v108
    %174 = vmatprep.mubr.f32.mxu0 %v45
    %175 = vmatmul.mubr.f32.gmra.mrb[0].mxu0 %v44
    %v176 = vpop.f32.mrb[0].mxu0
    %v177 = vadd.f32 0.0, %v176
    %v178 = vpop.f32.mrb[0].mxu0
    %v179 = vadd.f32 0.0, %v178
    %180 = vdwg.mxu0
    %v181 = vld [vmem:[%s1] sm:$0xff]
    %vm182 = vcmask 64512
    %v184 = vsel %vm182, %v181, 0
    %186 = vmatprep.subr.mxu0 %v179
    %187 = vmatpush1.msra.mxu0 %v177
    %188 = vmatprep.subr.mxu0 0.0
    %189 = vmatpush1.msra.mxu0 0.0
    %190 = vmatprep.subr.mxu0 0.0
    %191 = vmatpush1.msra.mxu0 0.0
    %192 = vmatprep.subr.mxu0 0.0
    %193 = vmatpush1.msra.mxu0 0.0
    %194 = vmatprep.subr.mxu0 0.0
    %195 = vmatpush1.msra.mxu0 0.0
    %196 = vmatprep.subr.mxu0 0.0
    %197 = vmatpush1.msra.mxu0 0.0
    %198 = vmatprep.subr.mxu0 0.0
    %199 = vmatpush1.msra.mxu0 0.0
    %200 = vmatprep.subr.mxu0 0.0
    %201 = vmatpush1.msra.mxu0 0.0
    %202 = vmatprep.subr.mxu0 0.0
    %203 = vmatpush1.msra.mxu0 0.0
    %204 = vmatprep.subr.mxu0 0.0
    %205 = vmatpush1.msra.mxu0 0.0
    %206 = vmatprep.subr.mxu0 0.0
    %207 = vmatpush1.msra.mxu0 0.0
    %208 = vmatprep.subr.mxu0 0.0
    %209 = vmatpush1.msra.mxu0 0.0
    %210 = vmatprep.subr.mxu0 0.0
    %211 = vmatpush1.msra.mxu0 0.0
    %212 = vmatprep.subr.mxu0 0.0
    %213 = vmatpush1.msra.mxu0 0.0
    %214 = vmatprep.subr.mxu0 0.0
    %215 = vmatpush1.msra.mxu0 0.0
    %216 = vmatprep.subr.mxu0 0.0
    %217 = vmatpush1.msra.mxu0 0.0
    %218 = vmatprep.subr.mxu0 0.0
    %219 = vmatpush1.msra.mxu0 0.0
    %220 = vmatprep.subr.mxu0 0.0
    %221 = vmatpush1.msra.mxu0 0.0
    %222 = vmatprep.subr.mxu0 0.0
    %223 = vmatpush1.msra.mxu0 0.0
    %224 = vmatprep.subr.mxu0 0.0
    %225 = vmatpush1.msra.mxu0 0.0
    %226 = vmatprep.subr.mxu0 0.0
    %227 = vmatpush1.msra.mxu0 0.0
    %228 = vmatprep.subr.mxu0 0.0
    %229 = vmatpush1.msra.mxu0 0.0
    %230 = vmatprep.subr.mxu0 0.0
    %231 = vmatpush1.msra.mxu0 0.0
    %232 = vmatprep.subr.mxu0 0.0
    %233 = vmatpush1.msra.mxu0 0.0
    %234 = vmatprep.subr.mxu0 0.0
    %235 = vmatpush1.msra.mxu0 0.0
    %236 = vmatprep.subr.mxu0 0.0
    %237 = vmatpush1.msra.mxu0 0.0
    %238 = vmatprep.subr.mxu0 0.0
    %239 = vmatpush1.msra.mxu0 0.0
    %240 = vmatprep.subr.mxu0 0.0
    %241 = vmatpush1.msra.mxu0 0.0
    %242 = vmatprep.subr.mxu0 0.0
    %243 = vmatpush1.msra.mxu0 0.0
    %244 = vmatprep.subr.mxu0 0.0
    %245 = vmatpush1.msra.mxu0 0.0
    %246 = vmatprep.subr.mxu0 0.0
    %247 = vmatpush1.msra.mxu0 0.0
    %248 = vmatprep.subr.mxu0 0.0
    %249 = vmatpush1.msra.mxu0 0.0
    %250 = vmatprep.mubr.f32.mxu0 0.0
    %251 = vmatmul.mubr.f32.gmra.mrb[0].mxu0 %v184
    %v252 = vpop.f32.mrb[0].mxu0
    %v253 = vadd.f32 0.0, %v252
    %v254 = vpop.f32.mrb[0].mxu0
    %v255 = vadd.f32 0.0, %v254
    %256 = vdwg.mxu0
    %v257 = vadd.f32 %v44, %v253
    %v258 = vadd.f32 %v45, %v255
    %v259 = vld [vmem:[%s3] sm:$0xff]
    %261 = vset.pattern.permute.xlu0 0
    %262 = vperm.xlu0 %261, %v259
    %v263 = vpop.permute.xlu0 %262
    %v265 = vadd.f32 %v257, %v263
    %v266 = vadd.f32 %v258, %v263
    %267 = vst [vmem:[#allocation7] sm:$0xff] %v265
    %268 = vst [vmem:[#allocation7 + $0x8] sm:$0xff] %v266
    // Predicated region
    $region26: #{tpu_custom_call.1} parent=1 // pred_check
      _
    $region27: #{tpu_custom_call.1} parent=1 // pred_check_branch
      %270 = sbr.rel (0) target = $region29
    $region28: #{tpu_custom_call.1} parent=1 // pred_region
      %s272 = ssub.s32 256, 256
      %273 = vsyncadd [#allocation4], %s272
      %s275 = sshll.u32 [#allocation7], 4
      %s276 = int_to_ptr.vmem [resolvable:$true] %s275
      %278 = dma.vmem_to_hbm [thread:$0]  %s276, 256, %s4, [#allocation4]
    $region29: #{tpu_custom_call.1} parent=1 // pred_fallthru
      _
    // Predicated region
    $region30: #{tpu_custom_call.1} parent=1 // pred_check
      _
    $region31: #{tpu_custom_call.1} parent=1 // pred_check_branch
      %280 = sbr.rel (0) target = $region33
    $region32: #{tpu_custom_call.1} parent=1 // pred_region
      %281 = dma.done [#allocation4], 256
    $region33: #{tpu_custom_call.1} parent=1 // pred_fallthru
      _
    %282 = vsyncpa [#allocation3], 1
    %283 = vsyncpa [#allocation6], 1
    %284 = vsyncpa [#allocation4], 1

</llo_original>
